<compile_context>
chip_gen: v5e
topology: v5e:2x2
jax: 0.10.0
libtpu: 0.0.40
codegen_flags: <defaults>
</compile_context>

<pallas_src>
import math

import jax
import jax.numpy as jnp
from jax import lax
from jax.experimental import pallas as pl
from jax.experimental.pallas import tpu as pltpu


def _attention_decoding_kernel(
    qin_ref,    # (B, 2AF)        bf16  [pooled global feature | all agents' node-0 features]
    nodes_ref,  # (B*(N-1), AF)   bf16  nodes 1..N-1, agent blocks on the lane axis
    wq_ref,     # (2AF, AF)       bf16  glb_embedding weight (scale folded)
    bq_ref,     # (1, AF)         f32   glb_embedding bias   (scale folded)
    wkvz_ref,   # (AF, 3AF)       bf16  node_embedding weight, [K|V|Z] regions, block-diag
    bkvz_ref,   # (1, 3AF)        f32
    wp_ref,     # (3AF, 3AF)      bf16  project_out, V-region rows -> Z-region cols (scaled)
    bp_ref,     # (B*A, 3AF)      f32   project_out bias placed per-row in the Z-region block
    mq_ref,     # (A, AF)         bf16  0/1 mask: agent a keeps its own F-block of q
    mv_ref,     # (B*A, 3AF)      bf16  0/1 mask: row (b,a) keeps its V-region diagonal block
    nm_ref,     # (B*A, B*(N-1))  f32   0 on same-batch entries, -1e30 on cross-batch entries
    out_ref,    # (B*A, B*(N-1))  f32   cross-agent softmax probabilities (valid on the strip)
):
    f32 = jnp.float32
    bf16 = jnp.bfloat16
    B = qin_ref.shape[0]
    A = mq_ref.shape[0]
    AF = wq_ref.shape[1]
    BN = nm_ref.shape[1]

    # 1) Q projection for all agents at once (1/sqrt(F) already folded into wq/bq).
    q = jnp.dot(qin_ref[...], wq_ref[...], preferred_element_type=f32) + bq_ref[...]  # (B, AF)

    # 2) K/V/Z projections for all agents in one block-diagonal matmul.
    kvz = (jnp.dot(nodes_ref[...], wkvz_ref[...], preferred_element_type=f32)
           + bkvz_ref[...])                                                # (B*Nm1, 3AF) f32
    kvz_b = kvz.astype(bf16)

    # Per-(batch, agent) query rows: broadcast q over agents, keep only agent a's F-block.
    q_rows = (q.astype(bf16)[:, None, :] * mq_ref[...][None, :, :]).reshape(B * A, AF)

    # 3) Attention scores for every (batch, agent) row against every (batch, node) column.
    s = lax.dot_general(q_rows, kvz_b[:, :AF], (((1,), (1,)), ((), ())),
                        preferred_element_type=f32)                       # (B*A, B*Nm1)
    s = s + nm_ref[...]                       # cross-batch entries -> -1e30
    s = s - jnp.max(s, axis=-1, keepdims=True)
    e = jnp.exp(s)                            # masked entries underflow to exactly 0
    attn = e * (1.0 / jnp.sum(e, axis=-1, keepdims=True))                 # (B*A, B*Nm1) f32

    # 4) Attention context; the V-region diagonal block of each row is the real context.
    ctx = jnp.dot(attn.astype(bf16), kvz_b, preferred_element_type=f32)   # (B*A, 3AF)
    ctx_m = ctx.astype(bf16) * mv_ref[...]

    # 5) project_out (scale folded): maps the V region block-diagonally into the Z region.
    ctx2 = (jnp.dot(ctx_m, wp_ref[...], preferred_element_type=f32)
            + bp_ref[...])                                                # (B*A, 3AF)

    # 6) Logits: ctx2 is exactly zero outside its Z-region diagonal block, so contracting
    #    against the full K|V|Z activation picks out ctx2 . logit_K for the right agent.
    lg = lax.dot_general(ctx2.astype(bf16), kvz_b, (((1,), (1,)), ((), ())),
                         preferred_element_type=f32)                      # (B*A, B*Nm1)
    lgt = jnp.tanh(lg) * 10.0

    # Final cross-agent softmax (PyTorch Softmax(dim=2)), exact.
    lgt3 = lgt.reshape(B, A, BN)
    m = jnp.max(lgt3, axis=1, keepdims=True)
    e2 = jnp.exp(lgt3 - m)
    probs = e2 / jnp.sum(e2, axis=1, keepdims=True)
    out_ref[...] = probs.reshape(B * A, BN)


def _block_diag(w):
    """(A, F, G) per-agent matrices -> (A*F, A*G) block-diagonal matrix."""
    A, Fd, Gd = w.shape
    eye = jnp.eye(A, dtype=w.dtype)
    return jnp.einsum("ab,afg->afbg", eye, w).reshape(A * Fd, A * Gd)


def attention_decoding_forward(nfeature, params):
    """nfeature: (B, anum, fsize, N, 1) f32  ->  (B, N-1, anum) f32 probabilities."""
    B, A, F, N, _ = nfeature.shape
    Nm1 = N - 1
    AF = A * F
    scale = 1.0 / math.sqrt(F)
    bf16 = jnp.bfloat16
    f32 = jnp.float32

    # ---- activations: flat, lane-dense, bf16 ----
    x = nfeature[..., 0]                                            # (B, A, F, N)
    glbflat = jnp.max(x, axis=3).reshape(B, AF)                     # (B, AF)
    first = x[:, :, :, 0].reshape(B, AF)                            # (B, AF)  all agents' node 0
    qin = jnp.concatenate([glbflat, first], axis=1).astype(bf16)    # (B, 2AF)
    nodes = jnp.transpose(x[:, :, :, 1:], (0, 3, 1, 2)).reshape(B * Nm1, AF).astype(bf16)

    # ---- weights: block-diagonal packing, scale folding, bf16 matmul operands ----
    # glb_embedding: torch.cat([glbfeature, node0]) folded into [wq_g stacked | blockdiag(wq_f)].
    wq_top = jnp.transpose(params["wq_g"], (1, 0, 2)).reshape(AF, AF)
    wq = (jnp.concatenate([wq_top, _block_diag(params["wq_f"])], axis=0) * scale).astype(bf16)
    bq = (params["bq"].reshape(1, AF) * scale).astype(f32)

    # node_embedding (1x1 conv F->3F): one (AF, 3AF) weight, [K|V|Z] regions, block-diag agents.
    wkvz = jnp.concatenate([_block_diag(params["wk"]),
                            _block_diag(params["wv"]),
                            _block_diag(params["wz"])], axis=1).astype(bf16)     # (AF, 3AF)
    bkvz = jnp.concatenate([params["bk"].reshape(1, AF),
                            params["bv"].reshape(1, AF),
                            params["bz"].reshape(1, AF)], axis=1).astype(f32)    # (1, 3AF)

    # project_out: V-region rows -> Z-region columns, block-diagonal, logit scale folded in.
    wp3 = jnp.zeros((3 * AF, 3 * AF), f32)
    wp3 = wp3.at[AF:2 * AF, 2 * AF:3 * AF].set(_block_diag(params["wp"]) * scale)
    wp3 = wp3.astype(bf16)
    bp_diag = _block_diag(params["bp"] * scale)                                  # (A, AF)
    bp_rows = jnp.tile(jnp.concatenate([jnp.zeros((A, 2 * AF), f32), bp_diag], axis=1),
                       (B, 1)).astype(f32)                                       # (B*A, 3AF)

    # ---- tiny structural masks (rows ordered r = b*A + a, columns c = b'*Nm1 + n) ----
    mask_q = _block_diag(jnp.ones((A, 1, F), f32)).astype(bf16)                  # (A, AF)
    mask_v = jnp.tile(jnp.concatenate([jnp.zeros((A, AF), f32),
                                       _block_diag(jnp.ones((A, 1, F), f32)),
                                       jnp.zeros((A, AF), f32)], axis=1),
                      (B, 1)).astype(bf16)                                       # (B*A, 3AF)
    rb = jnp.repeat(jnp.arange(B), A)
    cb = jnp.repeat(jnp.arange(B), Nm1)
    negmask = jnp.where(rb[:, None] == cb[None, :], 0.0, -1e30).astype(f32)      # (B*A, B*Nm1)

    out = pl.pallas_call(
        _attention_decoding_kernel,
        out_shape=jax.ShapeDtypeStruct((B * A, B * Nm1), jnp.float32),
        compiler_params=pltpu.CompilerParams(vmem_limit_bytes=32 * 1024 * 1024),
    )(qin, nodes, wq, bq, wkvz, bkvz, wp3, bp_rows, mask_q, mask_v, negmask)

    # Wrapper-side layout plumbing: keep only the same-batch strip, reorder to (B, N-1, anum).
    o = out.reshape(B, A, B, Nm1)
    idx = jnp.arange(B)
    res = o[idx, :, idx, :]                                                      # (B, A, Nm1)
    return jnp.transpose(res, (0, 2, 1))                                         # (B, Nm1, A)


def init_params(key, anum, fsize):
    """Deterministic synthetic parameters, stacked per agent (a bijective re-partitioning of
    the original module's Linear / 1x1-Conv weights in transposed, matmul-ready layout)."""
    ks = jax.random.split(key, 11)
    s = 0.1
    n = jax.random.normal
    f32 = jnp.float32
    return dict(
        # glb_embedding_a : Linear(anum*F + F -> F); transposed weight split into the
        # glbfeature block (wq_g) and the agent-own node-0 block (wq_f).
        wq_g=s * n(ks[0], (anum, anum * fsize, fsize), f32),
        wq_f=s * n(ks[1], (anum, fsize, fsize), f32),
        bq=s * n(ks[2], (anum, 1, fsize), f32),
        # node_embedding_a : 1x1 Conv2d(F -> 3F); transposed weight split into K / V / logit_K.
        wk=s * n(ks[3], (anum, fsize, fsize), f32),
        wv=s * n(ks[4], (anum, fsize, fsize), f32),
        wz=s * n(ks[5], (anum, fsize, fsize), f32),
        bk=s * n(ks[6], (anum, 1, fsize), f32),
        bv=s * n(ks[7], (anum, 1, fsize), f32),
        bz=s * n(ks[8], (anum, 1, fsize), f32),
        # project_out_a : Linear(F -> F)
        wp=s * n(ks[9], (anum, fsize, fsize), f32),
        bp=s * n(ks[10], (anum, 1, fsize), f32),
    )


def reference_forward(nfeature, params):
    """Pure-JAX mirror of the PyTorch forward with the same bf16 quantization points and
    scale folding as the kernel (matmul operands bf16, f32 accumulation / elementwise)."""
    f32 = jnp.float32
    qz = lambda t: t.astype(jnp.bfloat16).astype(f32)
    B, anum, fsize, N, _ = nfeature.shape
    scale = 1.0 / math.sqrt(fsize)
    x = nfeature[..., 0]                                                 # (B, A, F, N)
    glbflat = qz(jnp.max(x, axis=3).reshape(B, anum * fsize))
    outs = []
    for a in range(anum):
        first = qz(x[:, a, :, 0])                                        # (B, F)
        nodes = qz(jnp.transpose(x[:, a, :, 1:], (0, 2, 1)))             # (B, Nm1, F)
        q = (glbflat @ qz(params["wq_g"][a] * scale)
             + first @ qz(params["wq_f"][a] * scale) + params["bq"][a] * scale)
        k = jnp.einsum("bnf,fg->bng", nodes, qz(params["wk"][a])) + params["bk"][a]
        v = jnp.einsum("bnf,fg->bng", nodes, qz(params["wv"][a])) + params["bv"][a]
        z = jnp.einsum("bnf,fg->bng", nodes, qz(params["wz"][a])) + params["bz"][a]
        ucj = jnp.einsum("bf,bnf->bn", qz(q), qz(k))                     # scale folded into q
        attn = jax.nn.softmax(ucj, axis=-1)
        ctx = jnp.einsum("bn,bnf->bf", qz(attn), qz(v))
        ctx2 = qz(ctx) @ qz(params["wp"][a] * scale) + params["bp"][a] * scale
        logits = jnp.einsum("bf,bnf->bn", qz(ctx2), qz(z))
        outs.append(jnp.tanh(logits) * 10.0)
    res = jnp.stack(outs, axis=2)                                        # (B, Nm1, A)
    return jax.nn.softmax(res, axis=2)


if __name__ == "__main__":
    B, anum, fsize, N = 2, 3, 32, 9          # small shapes consistent with the module
    key = jax.random.PRNGKey(0)
    kx, kp = jax.random.split(key)

    nfeature = jax.random.normal(kx, (B, anum, fsize, N, 1), jnp.float32)
    params = init_params(kp, anum, fsize)

    fwd = jax.jit(attention_decoding_forward)
    out = jax.block_until_ready(fwd(nfeature, params))

    ref = reference_forward(nfeature, params)
    assert out.shape == (B, N - 1, anum), out.shape
    assert bool(jnp.all(jnp.isfinite(out))), "non-finite output"
    max_err = float(jnp.max(jnp.abs(out - ref)))
    assert jnp.allclose(out, ref, atol=1e-2, rtol=1e-2), f"mismatch vs reference: {max_err}"

    print("KERNEL_OK")
</pallas_src>

<mosaic_0001>
module attributes {stable_mosaic.version = 11 : i64} {
  func.func @_attention_decoding_kernel(%arg0: memref<2x192xbf16, #tpu.memory_space<vmem>>, %arg1: memref<16x96xbf16, #tpu.memory_space<vmem>>, %arg2: memref<192x96xbf16, #tpu.memory_space<vmem>>, %arg3: memref<1x96xf32, #tpu.memory_space<vmem>>, %arg4: memref<96x288xbf16, #tpu.memory_space<vmem>>, %arg5: memref<1x288xf32, #tpu.memory_space<vmem>>, %arg6: memref<288x288xbf16, #tpu.memory_space<vmem>>, %arg7: memref<6x288xf32, #tpu.memory_space<vmem>>, %arg8: memref<3x96xbf16, #tpu.memory_space<vmem>>, %arg9: memref<6x288xbf16, #tpu.memory_space<vmem>>, %arg10: memref<6x16xf32, #tpu.memory_space<vmem>>, %arg11: memref<6x16xf32, #tpu.memory_space<vmem>>) attributes {dimension_semantics = [], scalar_prefetch = 0 : i64, scratch_operands = 0 : i64, tpu.core_type = #tpu.core_type<tc>} {
    %c0 = arith.constant 0 : index
    %c0_0 = arith.constant 0 : index
    %0 = vector.load %arg0[%c0, %c0_0] : memref<2x192xbf16, #tpu.memory_space<vmem>>, vector<2x192xbf16>
    %c0_1 = arith.constant 0 : index
    %c0_2 = arith.constant 0 : index
    %1 = vector.load %arg2[%c0_1, %c0_2] : memref<192x96xbf16, #tpu.memory_space<vmem>>, vector<192x96xbf16>
    %cst = arith.constant dense<0.000000e+00> : vector<2x96xf32>
    %2 = tpu.matmul %0, %1, %cst {dimension_numbers = #tpu.dot_dimension_numbers<[1], [0], [0], [1], [0, 0, 1, 1], [], []>} : vector<2x192xbf16>, vector<192x96xbf16>, vector<2x96xf32> -> vector<2x96xf32>
    %c0_3 = arith.constant 0 : index
    %c0_4 = arith.constant 0 : index
    %3 = vector.load %arg3[%c0_3, %c0_4] : memref<1x96xf32, #tpu.memory_space<vmem>>, vector<1x96xf32>
    %4 = vector.broadcast %3 : vector<1x96xf32> to vector<2x96xf32>
    %5 = arith.addf %2, %4 : vector<2x96xf32>
    %c0_5 = arith.constant 0 : index
    %c0_6 = arith.constant 0 : index
    %6 = vector.load %arg1[%c0_5, %c0_6] : memref<16x96xbf16, #tpu.memory_space<vmem>>, vector<16x96xbf16>
    %c0_7 = arith.constant 0 : index
    %c0_8 = arith.constant 0 : index
    %7 = vector.load %arg4[%c0_7, %c0_8] : memref<96x288xbf16, #tpu.memory_space<vmem>>, vector<96x288xbf16>
    %cst_9 = arith.constant dense<0.000000e+00> : vector<16x288xf32>
    %8 = tpu.matmul %6, %7, %cst_9 {dimension_numbers = #tpu.dot_dimension_numbers<[1], [0], [0], [1], [0, 0, 1, 1], [], []>} : vector<16x96xbf16>, vector<96x288xbf16>, vector<16x288xf32> -> vector<16x288xf32>
    %c0_10 = arith.constant 0 : index
    %c0_11 = arith.constant 0 : index
    %9 = vector.load %arg5[%c0_10, %c0_11] : memref<1x288xf32, #tpu.memory_space<vmem>>, vector<1x288xf32>
    %10 = vector.broadcast %9 : vector<1x288xf32> to vector<16x288xf32>
    %11 = arith.addf %8, %10 : vector<16x288xf32>
    %12 = arith.truncf %11 : vector<16x288xf32> to vector<16x288xbf16>
    %13 = arith.truncf %5 : vector<2x96xf32> to vector<2x96xbf16>
    %14 = vector.shape_cast %13 : vector<2x96xbf16> to vector<2x1x96xbf16>
    %c0_12 = arith.constant 0 : index
    %c0_13 = arith.constant 0 : index
    %15 = vector.load %arg8[%c0_12, %c0_13] : memref<3x96xbf16, #tpu.memory_space<vmem>>, vector<3x96xbf16>
    %16 = vector.shape_cast %15 : vector<3x96xbf16> to vector<1x3x96xbf16>
    %17 = vector.broadcast %14 : vector<2x1x96xbf16> to vector<2x3x96xbf16>
    %18 = vector.broadcast %16 : vector<1x3x96xbf16> to vector<2x3x96xbf16>
    %19 = arith.mulf %17, %18 : vector<2x3x96xbf16>
    %20 = vector.shape_cast %19 : vector<2x3x96xbf16> to vector<6x96xbf16>
    %21 = vector.extract_strided_slice %12 {offsets = [0, 0], sizes = [16, 96], strides = [1, 1]} : vector<16x288xbf16> to vector<16x96xbf16>
    %cst_14 = arith.constant dense<0.000000e+00> : vector<6x16xf32>
    %22 = tpu.matmul %20, %21, %cst_14 {dimension_numbers = #tpu.dot_dimension_numbers<[1], [1], [0], [0], [0, 0, 1, 0], [], []>} : vector<6x96xbf16>, vector<16x96xbf16>, vector<6x16xf32> -> vector<6x16xf32>
    %c0_15 = arith.constant 0 : index
    %c0_16 = arith.constant 0 : index
    %23 = vector.load %arg10[%c0_15, %c0_16] : memref<6x16xf32, #tpu.memory_space<vmem>>, vector<6x16xf32>
    %24 = arith.addf %22, %23 : vector<6x16xf32>
    %cst_17 = arith.constant dense<0xFF800000> : vector<6xf32>
    %25 = vector.multi_reduction <maximumf>, %24, %cst_17 [1] : vector<6x16xf32> to vector<6xf32>
    %26 = vector.shape_cast %25 : vector<6xf32> to vector<6x1xf32>
    %27 = vector.broadcast %26 : vector<6x1xf32> to vector<6x16xf32>
    %28 = arith.subf %24, %27 : vector<6x16xf32>
    %29 = math.exp %28 : vector<6x16xf32>
    %cst_18 = arith.constant dense<0.000000e+00> : vector<6xf32>
    %30 = vector.multi_reduction <add>, %29, %cst_18 [1] : vector<6x16xf32> to vector<6xf32>
    %31 = vector.shape_cast %30 : vector<6xf32> to vector<6x1xf32>
    %cst_19 = arith.constant 1.000000e+00 : f32
    %32 = vector.broadcast %cst_19 : f32 to vector<6x1xf32>
    %33 = arith.divf %32, %31 : vector<6x1xf32>
    %34 = vector.broadcast %33 : vector<6x1xf32> to vector<6x16xf32>
    %35 = arith.mulf %29, %34 : vector<6x16xf32>
    %36 = arith.truncf %35 : vector<6x16xf32> to vector<6x16xbf16>
    %cst_20 = arith.constant dense<0.000000e+00> : vector<6x288xf32>
    %37 = tpu.matmul %36, %12, %cst_20 {dimension_numbers = #tpu.dot_dimension_numbers<[1], [0], [0], [1], [0, 0, 1, 1], [], []>} : vector<6x16xbf16>, vector<16x288xbf16>, vector<6x288xf32> -> vector<6x288xf32>
    %38 = arith.truncf %37 : vector<6x288xf32> to vector<6x288xbf16>
    %c0_21 = arith.constant 0 : index
    %c0_22 = arith.constant 0 : index
    %39 = vector.load %arg9[%c0_21, %c0_22] : memref<6x288xbf16, #tpu.memory_space<vmem>>, vector<6x288xbf16>
    %40 = arith.mulf %38, %39 : vector<6x288xbf16>
    %c0_23 = arith.constant 0 : index
    %c0_24 = arith.constant 0 : index
    %41 = vector.load %arg6[%c0_23, %c0_24] : memref<288x288xbf16, #tpu.memory_space<vmem>>, vector<288x288xbf16>
    %cst_25 = arith.constant dense<0.000000e+00> : vector<6x288xf32>
    %42 = tpu.matmul %40, %41, %cst_25 {dimension_numbers = #tpu.dot_dimension_numbers<[1], [0], [0], [1], [0, 0, 1, 1], [], []>} : vector<6x288xbf16>, vector<288x288xbf16>, vector<6x288xf32> -> vector<6x288xf32>
    %c0_26 = arith.constant 0 : index
    %c0_27 = arith.constant 0 : index
    %43 = vector.load %arg7[%c0_26, %c0_27] : memref<6x288xf32, #tpu.memory_space<vmem>>, vector<6x288xf32>
    %44 = arith.addf %42, %43 : vector<6x288xf32>
    %45 = arith.truncf %44 : vector<6x288xf32> to vector<6x288xbf16>
    %cst_28 = arith.constant dense<0.000000e+00> : vector<6x16xf32>
    %46 = tpu.matmul %45, %12, %cst_28 {dimension_numbers = #tpu.dot_dimension_numbers<[1], [1], [0], [0], [0, 0, 1, 0], [], []>} : vector<6x288xbf16>, vector<16x288xbf16>, vector<6x16xf32> -> vector<6x16xf32>
    %47 = math.tanh %46 : vector<6x16xf32>
    %cst_29 = arith.constant 1.000000e+01 : f32
    %48 = vector.broadcast %cst_29 : f32 to vector<6x16xf32>
    %49 = arith.mulf %47, %48 : vector<6x16xf32>
    %50 = vector.shape_cast %49 : vector<6x16xf32> to vector<2x3x16xf32>
    %cst_30 = arith.constant dense<0xFF800000> : vector<2x16xf32>
    %51 = vector.multi_reduction <maximumf>, %50, %cst_30 [1] : vector<2x3x16xf32> to vector<2x16xf32>
    %52 = vector.shape_cast %51 : vector<2x16xf32> to vector<2x1x16xf32>
    %53 = vector.broadcast %52 : vector<2x1x16xf32> to vector<2x3x16xf32>
    %54 = arith.subf %50, %53 : vector<2x3x16xf32>
    %55 = math.exp %54 : vector<2x3x16xf32>
    %cst_31 = arith.constant dense<0.000000e+00> : vector<2x16xf32>
    %56 = vector.multi_reduction <add>, %55, %cst_31 [1] : vector<2x3x16xf32> to vector<2x16xf32>
    %57 = vector.shape_cast %56 : vector<2x16xf32> to vector<2x1x16xf32>
    %58 = vector.broadcast %57 : vector<2x1x16xf32> to vector<2x3x16xf32>
    %59 = arith.divf %55, %58 : vector<2x3x16xf32>
    %60 = vector.shape_cast %59 : vector<2x3x16xf32> to vector<6x16xf32>
    %c0_32 = arith.constant 0 : index
    %c0_33 = arith.constant 0 : index
    %61 = vector.load %arg11[%c0_32, %c0_33] : memref<6x16xf32, #tpu.memory_space<vmem>>, vector<6x16xf32>
    tpu.vector_store %arg11[%c0_32, %c0_33], %60 {strides = array<i32>} : memref<6x16xf32, #tpu.memory_space<vmem>>, vector<6x16xf32>,
    return
  }
}

</mosaic_0001>

<llo_original>
// kernel: squeeze.0
$region0: #{squeeze.0}
  %s0 = inlined_call_operand.vmem [shape: bf16[2,3,32,1], index: 0, kind: input, shape index: {}]
  %s1 = inlined_call_operand.vmem [shape: bf16[2,96], index: 1, kind: output, shape index: {}]
  $region1: #{squeeze.0} parent=0
    #allocation0 [shape = 'u8[4096]{0}', space=vmem, size = 0x1000, scoped, tag = 'scoped mem for output reshape']
    #allocation1 [shape = 'u8[8192]{0}', space=vmem, size = 0x2000, scoped, tag = 'scoped mem for input reshape']
    %s3 = ssub.s32 16, 1
    %s4 = scalar_lea.vmem %s0, 2
    %s5 = sshrl.u32 %s3, 1
    %s6 = sor.u32 %s3, %s5
    %s7 = sand.u32 %s6, 85
    %s8 = sshrl.u32 %s7, 1
    %s9 = sor.u32 %s7, %s8
    %s10 = sand.u32 51, %s9
    %s11 = sshrl.u32 %s10, 2
    %s12 = sor.u32 %s10, %s11
    %s13 = sand.u32 15, %s12
    %v14 = vld [vmem:[%s4] sm:%s13]
    %v15 = vunpack.c.l.bf16 %v14
    %v16 = vunpack.c.h.bf16 %v14
    %s17 = scalar_lea.vmem [#allocation1], 8
    %18 = vst [vmem:[%s17] sm:%s3] %v15
    %s19 = sshrl.u32 %s3, 1
    %s20 = sor.u32 %s3, %s19
    %s21 = sand.u32 %s20, 85
    %s22 = sshrl.u32 %s21, 1
    %s23 = sor.u32 %s21, %s22
    %s24 = sand.u32 51, %s23
    %s25 = sshrl.u32 %s24, 2
    %s26 = sor.u32 %s24, %s25
    %s27 = sand.u32 15, %s26
    %v28 = vld [vmem:[%s0] sm:%s27]
    %v29 = vunpack.c.l.bf16 %v28
    %v30 = vunpack.c.h.bf16 %v28
    %31 = vst [vmem:[#allocation1] sm:%s3] %v29
    %s32 = smov 3
    %v33 = vld [vmem:[#allocation1] ss:$8 sm:%s32]
    %vm34 = vcmask 261120
    %35 = vst.msk [vmem:[#allocation0] sm:$0x3] %vm34, %v33
    %s36 = scalar_lea.vmem [#allocation1], 2
    %s37 = smov 3
    %v38 = vld [vmem:[%s36] ss:$8 sm:%s37]
    %39 = vrot.lane.b32.xlu0 %v38, 64
    %v40 = vpop.permute.xlu0 %39
    %vm41 = vcmask 785920
    %42 = vst.msk [vmem:[#allocation0] sm:$0x3] %vm41, %v40
    %s43 = scalar_lea.vmem [#allocation1], 1
    %s44 = smov 3
    %v45 = vld [vmem:[%s43] ss:$8 sm:%s44]
    %46 = vrot.lane.b32.xlu0 %v45, 32
    %v47 = vpop.permute.xlu0 %46
    %vm48 = vcmask 523520
    %49 = vst.msk [vmem:[#allocation0] sm:$0x3] %vm48, %v47
    %s51 = ssub.s32 4, 1
    %v52 = vld [vmem:[#allocation0] sm:%s51]
    %v53 = vpack.c.bf16 0.0, %v52
    %s55 = ssub.s32 2, 1
    %56 = vst [vmem:[%s1] sm:%s55] %v53

// kernel: tile.14
$region0: #{tile.14}
  %s0 = inlined_call_operand.vmem [shape: f32[2,3,288], index: 0, kind: input, shape index: {}]
  %s1 = inlined_call_operand.vmem [shape: f32[6,288], index: 1, kind: output, shape index: {}]
  $region1: #{tile.14} parent=0
    #allocation0 [shape = 'u8[24576]{0}', space=vmem, size = 0x6000, scoped, tag = 'scoped mem for input reshape']
    %s3 = ssub.s32 16, 1
    %s4 = scalar_lea.vmem %s0, 20
    %v5 = vld [vmem:[%s4] sm:%s3]
    %s6 = scalar_lea.vmem [#allocation0], 40
    %7 = vst [vmem:[%s6] sm:%s3] %v5
    %s8 = scalar_lea.vmem %s0, 16
    %v9 = vld [vmem:[%s8] sm:%s3]
    %s10 = scalar_lea.vmem [#allocation0], 32
    %11 = vst [vmem:[%s10] sm:%s3] %v9
    %s12 = scalar_lea.vmem %s0, 12
    %v13 = vld [vmem:[%s12] sm:%s3]
    %s14 = scalar_lea.vmem [#allocation0], 24
    %15 = vst [vmem:[%s14] sm:%s3] %v13
    %s16 = scalar_lea.vmem %s0, 8
    %v17 = vld [vmem:[%s16] sm:%s3]
    %s18 = scalar_lea.vmem [#allocation0], 16
    %19 = vst [vmem:[%s18] sm:%s3] %v17
    %s20 = scalar_lea.vmem %s0, 4
    %v21 = vld [vmem:[%s20] sm:%s3]
    %s22 = scalar_lea.vmem [#allocation0], 8
    %23 = vst [vmem:[%s22] sm:%s3] %v21
    %v24 = vld [vmem:[%s0] sm:%s3]
    %25 = vst [vmem:[#allocation0] sm:%s3] %v24
    %s26 = scalar_lea.vmem [#allocation0], 16
    %v27 = vld [vmem:[%s26] sm:$0x7]
    %vm28 = vcmask 261120
    %s29 = scalar_lea.vmem %s1, 16
    %30 = vst.msk [vmem:[%s29] sm:$0x7] %vm28, %v27
    %s31 = scalar_lea.vmem [#allocation0], 40
    %v32 = vld [vmem:[%s31] sm:$0x7]
    %vm33 = vcmask 261120
    %s34 = scalar_lea.vmem %s1, 19
    %35 = vst.msk [vmem:[%s34] sm:$0x7] %vm33, %v32
    %v36 = vld [vmem:[#allocation0] sm:$0x7]
    %37 = vst [vmem:[%s1] sm:$0x7] %v36
    %s38 = scalar_lea.vmem [#allocation0], 8
    %v39 = vld [vmem:[%s38] sm:$0x7]
    %s40 = scalar_lea.vmem %s1, 8
    %41 = vst [vmem:[%s40] sm:$0x7] %v39
    %s42 = scalar_lea.vmem [#allocation0], 24
    %v43 = vld [vmem:[%s42] sm:$0x7]
    %s44 = scalar_lea.vmem %s1, 3
    %45 = vst [vmem:[%s44] sm:$0x7] %v43
    %s46 = scalar_lea.vmem [#allocation0], 32
    %v47 = vld [vmem:[%s46] sm:$0x7]
    %s48 = scalar_lea.vmem %s1, 11
    %49 = vst [vmem:[%s48] sm:$0x7] %v47

// kernel: eq.24
$region0: #{eq.24}
  %s0 = inlined_call_operand.vmem [shape: s32[2,3], index: 0, kind: input, shape index: {}]
  %s1 = inlined_call_operand.vmem [shape: s32[6], index: 1, kind: output, shape index: {}]
  $region1: #{eq.24} parent=0
    #allocation0 [shape = 'u8[4096]{0}', space=vmem, size = 0x1000, scoped, tag = 'scoped mem for output reshape']
    #allocation1 [shape = 'u8[4096]{0}', space=vmem, size = 0x1000, scoped, tag = 'scoped mem for input reshape']
    %s3 = ssub.s32 4, 1
    %v4 = vld [vmem:[%s0] sm:%s3]
    %5 = vst [vmem:[#allocation1] sm:%s3] %v4
    %v6 = vld [vmem:[#allocation1] sm:$0x1]
    %vm7 = vcmask 23552
    %8 = vst.msk [vmem:[#allocation0] sm:$0x1] %vm7, %v6
    %s9 = scalar_lea.vmem [#allocation1], 1
    %v10 = vld [vmem:[%s9] sm:$0x1]
    %11 = vrot.lane.b32.xlu0 %v10, 3
    %v12 = vpop.permute.xlu0 %11
    %vm13 = vcmask 48152
    %14 = vst.msk [vmem:[#allocation0] sm:$0x1] %vm13, %v12
    %s16 = ssub.s32 2, 1
    %v17 = vld [vmem:[#allocation0] sm:%s16]
    %s19 = ssub.s32 2, 1
    %20 = vst [vmem:[%s1] sm:%s19] %v17

// kernel: eq.27
$region0: #{eq.27}
  %s0 = inlined_call_operand.vmem [shape: s32[2,8], index: 0, kind: input, shape index: {}]
  %s1 = inlined_call_operand.vmem [shape: s32[16], index: 1, kind: output, shape index: {}]
  $region1: #{eq.27} parent=0
    #allocation0 [shape = 'u8[4096]{0}', space=vmem, size = 0x1000, scoped, tag = 'scoped mem for output reshape']
    #allocation1 [shape = 'u8[4096]{0}', space=vmem, size = 0x1000, scoped, tag = 'scoped mem for input reshape']
    %s3 = ssub.s32 4, 1
    %v4 = vld [vmem:[%s0] sm:%s3]
    %5 = vst [vmem:[#allocation1] sm:%s3] %v4
    %v6 = vld [vmem:[#allocation1] sm:$0x1]
    %vm7 = vcmask 64512
    %8 = vst.msk [vmem:[#allocation0] sm:$0x1] %vm7, %v6
    %s9 = scalar_lea.vmem [#allocation1], 1
    %v10 = vld [vmem:[%s9] sm:$0x1]
    %11 = vrot.lane.b32.xlu0 %v10, 8
    %v12 = vpop.permute.xlu0 %11
    %vm13 = vcmask 130112
    %14 = vst.msk [vmem:[#allocation0] sm:$0x1] %vm13, %v12
    %s16 = ssub.s32 2, 1
    %v17 = vld [vmem:[#allocation0] sm:%s16]
    %s19 = ssub.s32 2, 1
    %20 = vst [vmem:[%s1] sm:%s19] %v17

// kernel: attention_decoding_forward.1
$region0: #{attention_decoding_forward.1}
  #allocation0 [shape = 'u32[]', space=smem, size = 0x4, offset = 0x4, fixed_abs, tag = 'smem constant byte address 0x4 - core index']
  #allocation1 [shape = 'u32[72,128]{1,0:T(1,128)}', space=vmem, size = 0x9000, scoped, tag = 'internal scratch']
  %s0 = inlined_call_operand.vmem [shape: bf16[2,192], index: 0, kind: input, shape index: {}]
  %s1 = inlined_call_operand.vmem [shape: bf16[16,96], index: 1, kind: input, shape index: {}]
  %s2 = inlined_call_operand.vmem [shape: bf16[192,96], index: 2, kind: input, shape index: {}]
  %s3 = inlined_call_operand.vmem [shape: f32[1,96], index: 3, kind: input, shape index: {}]
  %s4 = inlined_call_operand.vmem [shape: bf16[96,288], index: 4, kind: input, shape index: {}]
  %s5 = inlined_call_operand.vmem [shape: f32[1,288], index: 5, kind: input, shape index: {}]
  %s6 = inlined_call_operand.vmem [shape: bf16[288,288], index: 6, kind: input, shape index: {}]
  %s7 = inlined_call_operand.vmem [shape: f32[6,288], index: 7, kind: input, shape index: {}]
  %s8 = inlined_call_operand.vmem [shape: bf16[3,96], index: 8, kind: input, shape index: {}]
  %s9 = inlined_call_operand.vmem [shape: bf16[6,288], index: 9, kind: input, shape index: {}]
  %s10 = inlined_call_operand.vmem [shape: f32[6,16], index: 10, kind: input, shape index: {}]
  %s11 = inlined_call_operand.vmem [shape: f32[6,16], index: 11, kind: output, shape index: {}]
  %s12 = sld [smem:[#allocation0]]
  $region54: #{attention_decoding_forward.1} parent=0
    _
  %s14 = ssub.s32 1, %s12
  %s15 = scalar_select 0, %s14, %s12
  // Predicated region
  $region2: #{attention_decoding_forward.1} parent=0 // pred_check
    _
  $region3: #{attention_decoding_forward.1} parent=0 // pred_check_branch
    %17 = sbr.rel (0) target = $region5
  $region4: #{attention_decoding_forward.1} parent=0 // pred_region
    _
  $region5: #{attention_decoding_forward.1} parent=0 // pred_fallthru
    _
  // Predicated region
  $region6: #{attention_decoding_forward.1} parent=0 // pred_check
    _
  $region7: #{attention_decoding_forward.1} parent=0 // pred_check_branch
    %19 = sbr.rel (0) target = $region9
  $region8: #{attention_decoding_forward.1} parent=0 // pred_region
    _
  $region9: #{attention_decoding_forward.1} parent=0 // pred_fallthru
    _
  // Predicated region
  $region10: #{attention_decoding_forward.1} parent=0 // pred_check
    _
  $region11: #{attention_decoding_forward.1} parent=0 // pred_check_branch
    %21 = sbr.rel (0) target = $region13
  $region12: #{attention_decoding_forward.1} parent=0 // pred_region
    _
  $region13: #{attention_decoding_forward.1} parent=0 // pred_fallthru
    _
  // Predicated region
  $region14: #{attention_decoding_forward.1} parent=0 // pred_check
    _
  $region15: #{attention_decoding_forward.1} parent=0 // pred_check_branch
    %23 = sbr.rel (0) target = $region17
  $region16: #{attention_decoding_forward.1} parent=0 // pred_region
    _
  $region17: #{attention_decoding_forward.1} parent=0 // pred_fallthru
    _
  // Predicated region
  $region18: #{attention_decoding_forward.1} parent=0 // pred_check
    _
  $region19: #{attention_decoding_forward.1} parent=0 // pred_check_branch
    %25 = sbr.rel (0) target = $region21
  $region20: #{attention_decoding_forward.1} parent=0 // pred_region
    _
  $region21: #{attention_decoding_forward.1} parent=0 // pred_fallthru
    _
  // Predicated region
  $region22: #{attention_decoding_forward.1} parent=0 // pred_check
    _
  $region23: #{attention_decoding_forward.1} parent=0 // pred_check_branch
    %27 = sbr.rel (0) target = $region25
  $region24: #{attention_decoding_forward.1} parent=0 // pred_region
    _
  $region25: #{attention_decoding_forward.1} parent=0 // pred_fallthru
    _
  // Predicated region
  $region26: #{attention_decoding_forward.1} parent=0 // pred_check
    _
  $region27: #{attention_decoding_forward.1} parent=0 // pred_check_branch
    %29 = sbr.rel (0) target = $region29
  $region28: #{attention_decoding_forward.1} parent=0 // pred_region
    _
  $region29: #{attention_decoding_forward.1} parent=0 // pred_fallthru
    _
  // Predicated region
  $region30: #{attention_decoding_forward.1} parent=0 // pred_check
    _
  $region31: #{attention_decoding_forward.1} parent=0 // pred_check_branch
    %31 = sbr.rel (0) target = $region33
  $region32: #{attention_decoding_forward.1} parent=0 // pred_region
    _
  $region33: #{attention_decoding_forward.1} parent=0 // pred_fallthru
    _
  // Predicated region
  $region34: #{attention_decoding_forward.1} parent=0 // pred_check
    _
  $region35: #{attention_decoding_forward.1} parent=0 // pred_check_branch
    %33 = sbr.rel (0) target = $region37
  $region36: #{attention_decoding_forward.1} parent=0 // pred_region
    _
  $region37: #{attention_decoding_forward.1} parent=0 // pred_fallthru
    _
  // Predicated region
  $region38: #{attention_decoding_forward.1} parent=0 // pred_check
    _
  $region39: #{attention_decoding_forward.1} parent=0 // pred_check_branch
    %35 = sbr.rel (0) target = $region41
  $region40: #{attention_decoding_forward.1} parent=0 // pred_region
    _
  $region41: #{attention_decoding_forward.1} parent=0 // pred_fallthru
    _
  // Predicated region
  $region42: #{attention_decoding_forward.1} parent=0 // pred_check
    _
  $region43: #{attention_decoding_forward.1} parent=0 // pred_check_branch
    %37 = sbr.rel (0) target = $region45
  $region44: #{attention_decoding_forward.1} parent=0 // pred_region
    _
  $region45: #{attention_decoding_forward.1} parent=0 // pred_fallthru
    _
  %v39 = vld [vmem:[%s0] sm:$0x3]
  %v40 = vld [vmem:[%s2] sm:$0xf]
  %v41 = vld [vmem:[%s2 + $0x4] sm:$0xf]
  %v42 = vld [vmem:[%s2 + $0x8] sm:$0xf]
  %v43 = vld [vmem:[%s2 + $0xc] sm:$0xf]
  %v44 = vld [vmem:[%s2 + $0x10] sm:$0xf]
  %v45 = vld [vmem:[%s2 + $0x14] sm:$0xf]
  %v46 = vld [vmem:[%s2 + $0x18] sm:$0xf]
  %v47 = vld [vmem:[%s2 + $0x1c] sm:$0xf]
  %v48 = vld [vmem:[%s2 + $0x20] sm:$0xf]
  %v49 = vld [vmem:[%s2 + $0x24] sm:$0xf]
  %v50 = vld [vmem:[%s2 + $0x28] sm:$0xf]
  %v51 = vld [vmem:[%s2 + $0x2c] sm:$0xf]
  %v52 = vld [vmem:[%s2 + $0x30] sm:$0xf]
  %v53 = vld [vmem:[%s2 + $0x34] sm:$0xf]
  %v54 = vld [vmem:[%s2 + $0x38] sm:$0xf]
  %v55 = vld [vmem:[%s2 + $0x3c] sm:$0xf]
  %v56 = vld [vmem:[%s2 + $0x40] sm:$0xf]
  %v57 = vld [vmem:[%s2 + $0x44] sm:$0xf]
  %v58 = vld [vmem:[%s2 + $0x48] sm:$0xf]
  %v59 = vld [vmem:[%s2 + $0x4c] sm:$0xf]
  %v60 = vld [vmem:[%s2 + $0x50] sm:$0xf]
  %v61 = vld [vmem:[%s2 + $0x54] sm:$0xf]
  %v62 = vld [vmem:[%s2 + $0x58] sm:$0xf]
  %v63 = vld [vmem:[%s2 + $0x5c] sm:$0xf]
  %v64 = vld [vmem:[%s3] sm:$0x1]
  %v66 = vperm.slane %v64, 0
  %69 = vst [vmem:[#allocation1] ss:$9 sm:$0xff] %v39
  %v70 = vld [vmem:[#allocation1] sm:$0xff]
  %v71 = vld [vmem:[#allocation1 + $0x9] sm:$0xff]
  %v97 = vunpack.c.l.b16 %v40
  %v98 = vunpack.c.l.b16 %v41
  %v99 = vunpack.c.l.b16 %v42
  %v100 = vunpack.c.l.b16 %v43
  %v101 = vunpack.c.l.b16 %v44
  %v102 = vunpack.c.l.b16 %v45
  %v103 = vunpack.c.l.b16 %v46
  %v104 = vunpack.c.l.b16 %v47
  %v105 = vunpack.c.l.b16 %v48
  %v106 = vunpack.c.l.b16 %v49
  %v107 = vunpack.c.l.b16 %v50
  %v108 = vunpack.c.l.b16 %v51
  %v109 = vunpack.c.l.b16 %v52
  %v110 = vunpack.c.l.b16 %v53
  %v111 = vunpack.c.l.b16 %v54
  %v112 = vunpack.c.l.b16 %v55
  %v113 = vunpack.c.l.b16 %v56
  %v114 = vunpack.c.l.b16 %v57
  %v115 = vunpack.c.l.b16 %v58
  %v116 = vunpack.c.l.b16 %v59
  %v117 = vunpack.c.l.b16 %v60
  %v118 = vunpack.c.l.b16 %v61
  %v119 = vunpack.c.l.b16 %v62
  %v120 = vunpack.c.l.b16 %v63
  %v121 = vpack.c.b16 %v98, %v97
  %v122 = vpack.c.b16 %v100, %v99
  %v123 = vpack.c.b16 %v102, %v101
  %v124 = vpack.c.b16 %v104, %v103
  %v125 = vpack.c.b16 %v106, %v105
  %v126 = vpack.c.b16 %v108, %v107
  %v127 = vpack.c.b16 %v110, %v109
  %v128 = vpack.c.b16 %v112, %v111
  %v129 = vpack.c.b16 %v114, %v113
  %v130 = vpack.c.b16 %v116, %v115
  %v131 = vpack.c.b16 %v118, %v117
  %v132 = vpack.c.b16 %v120, %v119
  %vm145 = vcmask 523264
  %v146 = vsel %vm145, %v71, 0
  %148 = vmatpush.bf16.msra.mxu0 %v128
  %149 = vmatpush.bf16.msra.mxu0 %v127
  %150 = vmatpush.bf16.msra.mxu0 %v126
  %151 = vmatpush.bf16.msra.mxu0 %v125
  %152 = vmatpush.bf16.msra.mxu0 %v124
  %153 = vmatpush.bf16.msra.mxu0 %v123
  %154 = vmatpush.bf16.msra.mxu0 %v122
  %155 = vmatpush.bf16.msra.mxu0 %v121
  %156 = vmatmul.bf16.gmra.mxu0 %v70
  %v157 = vpop.f32.mrf.mxu0
  %v158 = vadd.f32 %v66, %v157
  %v159 = vpop.f32.mrf.mxu0
  %160 = vdwg.mxu0
  %161 = vmatpush.bf16.msra.mxu0 0
  %162 = vmatpush.bf16.msra.mxu0 0
  %163 = vmatpush.bf16.msra.mxu0 0
  %164 = vmatpush.bf16.msra.mxu0 0
  %165 = vmatpush.bf16.msra.mxu0 %v132
  %166 = vmatpush.bf16.msra.mxu0 %v131
  %167 = vmatpush.bf16.msra.mxu0 %v130
  %168 = vmatpush.bf16.msra.mxu0 %v129
  %169 = vmatmul.bf16.gmra.mxu0 %v146
  %v170 = vpop.f32.mrf.mxu0
  %v171 = vadd.f32 %v158, %v170
  %v172 = vpop.f32.mrf.mxu0
  %173 = vdwg.mxu0
  %v174 = vld [vmem:[%s1] sm:$0xf]
  %v175 = vld [vmem:[%s1 + $0x4] sm:$0xf]
  %v176 = vld [vmem:[%s4] sm:$0xff]
  %v177 = vld [vmem:[%s4 + $0x8] sm:$0xf]
  %v178 = vld [vmem:[%s4 + $0xc] sm:$0xff]
  %v179 = vld [vmem:[%s4 + $0x14] sm:$0xf]
  %v180 = vld [vmem:[%s4 + $0x18] sm:$0xff]
  %v181 = vld [vmem:[%s4 + $0x20] sm:$0xf]
  %v182 = vld [vmem:[%s4 + $0x24] sm:$0xff]
  %v183 = vld [vmem:[%s4 + $0x2c] sm:$0xf]
  %v184 = vld [vmem:[%s4 + $0x30] sm:$0xff]
  %v185 = vld [vmem:[%s4 + $0x38] sm:$0xf]
  %v186 = vld [vmem:[%s4 + $0x3c] sm:$0xff]
  %v187 = vld [vmem:[%s4 + $0x44] sm:$0xf]
  %v188 = vld [vmem:[%s4 + $0x48] sm:$0xff]
  %v189 = vld [vmem:[%s4 + $0x50] sm:$0xf]
  %v190 = vld [vmem:[%s4 + $0x54] sm:$0xff]
  %v191 = vld [vmem:[%s4 + $0x5c] sm:$0xf]
  %v192 = vld [vmem:[%s4 + $0x60] sm:$0xff]
  %v193 = vld [vmem:[%s4 + $0x68] sm:$0xf]
  %v194 = vld [vmem:[%s4 + $0x6c] sm:$0xff]
  %v195 = vld [vmem:[%s4 + $0x74] sm:$0xf]
  %v196 = vld [vmem:[%s4 + $0x78] sm:$0xff]
  %v197 = vld [vmem:[%s4 + $0x80] sm:$0xf]
  %v198 = vld [vmem:[%s4 + $0x84] sm:$0xff]
  %v199 = vld [vmem:[%s4 + $0x8c] sm:$0xf]
  %v200 = vld [vmem:[%s5] sm:$0x7]
  %v202 = vperm.slane %v200, 0
  %v203 = vperm.slane %v200, 1
  %v204 = vperm.slane %v200, 2
  %v210 = vunpack.c.l.b16 %v174
  %v211 = vunpack.c.l.b16 %v175
  %v212 = vpack.c.b16 %v211, %v210
  %v237 = vunpack.c.l.b16 %v176
  %v238 = vunpack.c.h.b16 %v176
  %v239 = vunpack.c.l.b16 %v177
  %v240 = vunpack.c.l.b16 %v178
  %v241 = vunpack.c.h.b16 %v178
  %v242 = vunpack.c.l.b16 %v179
  %v243 = vunpack.c.l.b16 %v180
  %v244 = vunpack.c.h.b16 %v180
  %v245 = vunpack.c.l.b16 %v181
  %v246 = vunpack.c.l.b16 %v182
  %v247 = vunpack.c.h.b16 %v182
  %v248 = vunpack.c.l.b16 %v183
  %v249 = vunpack.c.l.b16 %v184
  %v250 = vunpack.c.h.b16 %v184
  %v251 = vunpack.c.l.b16 %v185
  %v252 = vunpack.c.l.b16 %v186
  %v253 = vunpack.c.h.b16 %v186
  %v254 = vunpack.c.l.b16 %v187
  %v255 = vunpack.c.l.b16 %v188
  %v256 = vunpack.c.h.b16 %v188
  %v257 = vunpack.c.l.b16 %v189
  %v258 = vunpack.c.l.b16 %v190
  %v259 = vunpack.c.h.b16 %v190
  %v260 = vunpack.c.l.b16 %v191
  %v261 = vunpack.c.l.b16 %v192
  %v262 = vunpack.c.h.b16 %v192
  %v263 = vunpack.c.l.b16 %v193
  %v264 = vunpack.c.l.b16 %v194
  %v265 = vunpack.c.h.b16 %v194
  %v266 = vunpack.c.l.b16 %v195
  %v267 = vunpack.c.l.b16 %v196
  %v268 = vunpack.c.h.b16 %v196
  %v269 = vunpack.c.l.b16 %v197
  %v270 = vunpack.c.l.b16 %v198
  %v271 = vunpack.c.h.b16 %v198
  %v272 = vunpack.c.l.b16 %v199
  %v273 = vpack.c.b16 %v240, %v237
  %v274 = vpack.c.b16 %v241, %v238
  %v275 = vpack.c.b16 %v242, %v239
  %v276 = vpack.c.b16 %v246, %v243
  %v277 = vpack.c.b16 %v247, %v244
  %v278 = vpack.c.b16 %v248, %v245
  %v279 = vpack.c.b16 %v252, %v249
  %v280 = vpack.c.b16 %v253, %v250
  %v281 = vpack.c.b16 %v254, %v251
  %v282 = vpack.c.b16 %v258, %v255
  %v283 = vpack.c.b16 %v259, %v256
  %v284 = vpack.c.b16 %v260, %v257
  %v285 = vpack.c.b16 %v264, %v261
  %v286 = vpack.c.b16 %v265, %v262
  %v287 = vpack.c.b16 %v266, %v263
  %v288 = vpack.c.b16 %v270, %v267
  %v289 = vpack.c.b16 %v271, %v268
  %v290 = vpack.c.b16 %v272, %v269
  %vm309 = vcmask 785408
  %v311 = vsel %vm309, %v212, 0
  %313 = vmatpush.bf16.msra.mxu0 0
  %314 = vmatpush.bf16.msra.mxu0 0
  %315 = vmatpush.bf16.msra.mxu0 %v288
  %316 = vmatpush.bf16.msra.mxu0 %v285
  %317 = vmatpush.bf16.msra.mxu0 %v282
  %318 = vmatpush.bf16.msra.mxu0 %v279
  %319 = vmatpush.bf16.msra.mxu0 %v276
  %320 = vmatpush.bf16.msra.mxu0 %v273
  %321 = vmatmul.bf16.gmra.mxu0 %v311
  %v322 = vpop.f32.mrf.mxu0
  %v323 = vadd.f32 %v202, %v322
  %v324 = vpop.f32.mrf.mxu0
  %v325 = vadd.f32 %v202, %v324
  %326 = vdwg.mxu0
  %327 = vmatpush.bf16.msra.mxu0 0
  %328 = vmatpush.bf16.msra.mxu0 0
  %329 = vmatpush.bf16.msra.mxu0 %v289
  %330 = vmatpush.bf16.msra.mxu0 %v286
  %331 = vmatpush.bf16.msra.mxu0 %v283
  %332 = vmatpush.bf16.msra.mxu0 %v280
  %333 = vmatpush.bf16.msra.mxu0 %v277
  %334 = vmatpush.bf16.msra.mxu0 %v274
  %335 = vmatmul.bf16.gmra.mxu0 %v311
  %v336 = vpop.f32.mrf.mxu0
  %v337 = vadd.f32 %v203, %v336
  %v338 = vpop.f32.mrf.mxu0
  %v339 = vadd.f32 %v203, %v338
  %340 = vdwg.mxu0
  %341 = vmatpush.bf16.msra.mxu0 0
  %342 = vmatpush.bf16.msra.mxu0 0
  %343 = vmatpush.bf16.msra.mxu0 %v290
  %344 = vmatpush.bf16.msra.mxu0 %v287
  %345 = vmatpush.bf16.msra.mxu0 %v284
  %346 = vmatpush.bf16.msra.mxu0 %v281
  %347 = vmatpush.bf16.msra.mxu0 %v278
  %348 = vmatpush.bf16.msra.mxu0 %v275
  %349 = vmatmul.bf16.gmra.mxu0 %v311
  %v350 = vpop.f32.mrf.mxu0
  %v351 = vadd.f32 %v204, %v350
  %v352 = vpop.f32.mrf.mxu0
  %v353 = vadd.f32 %v204, %v352
  %354 = vdwg.mxu0
  %v355 = vpack.c.bf16 %v337, %v323
  %v356 = vpack.c.bf16 %v351, %v351
  %v357 = vpack.c.bf16 %v339, %v325
  %v358 = vpack.c.bf16 %v353, %v353
  %v359 = vpack.c.bf16 %v171, %v171
  %v361 = vrot.slane %v359, 3
  %vm362 = vcmask 1040384
  %v365 = vsel %vm362, %v359, %v361
  %v367 = vunpack.i.l.s16 %v365
  %v368 = vunpack.i.h.s16 %v365
  %v369 = vld [vmem:[%s8] sm:$0x3]
  %v370 = vpack.i.b16 %v367, %v367
  %v371 = vpack.i.b16 %v368, %v368
  %v372 = vperm.slane %v370, 0
  %v373 = vperm.slane %v371, 0
  %v375 = vpack.i.b16 %v372, %v372
  %v377 = vperm.slane %v375, 0
  %v379 = vpack.i.b16 %v373, %v373
  %v381 = vperm.slane %v379, 0
  %v382 = vunpack.c.l.bf16 %v377
  %v383 = vunpack.c.l.bf16 %v381
  %v384 = vunpack.c.l.bf16 %v369
  %v385 = vmul.f32 %v382, %v384
  %v386 = vmul.f32 %v383, %v384
  %v387 = vpack.c.bf16 %v385, %v385
  %v388 = vpack.c.bf16 %v386, %v386
  %v391 = vrot.slane %v387, 3
  %v392 = vrot.slane %v388, 3
  %v395 = vsel %vm362, %v387, %v391
  %vm397 = vcmask 1041409
  %v398 = vsel %vm397, %v387, %v391
  %v400 = vrot.slane %v398, 1
  %v403 = vsel %vm362, %v388, %v392
  %v405 = vsel %vm397, %v388, %v392
  %v407 = vrot.slane %v405, 1
  %v408 = vunpack.i.l.s16 %v395
  %v409 = vunpack.i.h.s16 %v395
  %v410 = vunpack.i.l.s16 %v400
  %v411 = vunpack.i.l.s16 %v403
  %v412 = vunpack.i.h.s16 %v403
  %v413 = vunpack.i.l.s16 %v407
  %v414 = vld [vmem:[%s10] sm:$0x3f]
  %v415 = vpack.i.b16 %v409, %v408
  %v416 = vpack.i.b16 %v411, %v410
  %v417 = vpack.i.b16 %v413, %v412
  %419 = vst [vmem:[#allocation1] ss:$9 sm:$0xff] %v415
  %s421 = scalar_lea.vmem [#allocation1], 1
  %422 = vst [vmem:[%s421] ss:$9 sm:$0xff] %v416
  %s424 = scalar_lea.vmem [#allocation1], 2
  %425 = vst [vmem:[%s424] ss:$9 sm:$0xff] %v417
  %v426 = vld [vmem:[#allocation1] sm:$0xff]
  %v429 = vunpack.c.l.b16 %v355
  %v430 = vunpack.c.l.b16 %v357
  %v431 = vpack.c.b16 %v430, %v429
  %v432 = vsel %vm309, %v426, 0
  %v435 = vsel %vm309, %v431, 0
  %437 = vmatpush.bf16.xpose.msra.mxu0 0
  %438 = vmatpush.bf16.xpose.msra.mxu0 0
  %439 = vmatpush.bf16.xpose.msra.mxu0 0
  %440 = vmatpush.bf16.xpose.msra.mxu0 0
  %441 = vmatpush.bf16.xpose.msra.mxu0 0
  %442 = vmatpush.bf16.xpose.msra.mxu0 0
  %443 = vmatpush.bf16.xpose.msra.mxu0 0
  %444 = vmatpush.bf16.xpose.msra.mxu0 %v435
  %445 = vmatmul.bf16.gmra.mxu0 %v432
  %v446 = vpop.f32.mrf.mxu0
  %v447 = vadd.f32 %v414, %v446
  %v448 = vpop.f32.mrf.mxu0
  %449 = vdwg.mxu0
  %vm450 = vcmask 128000
  %v451 = vsel %vm450, %v447, -inf
  %452 = vmax.xlane.f32.xlu0 %v451
  %v453 = vpop.xlane.xlu0 %452
  %v454 = vsub.f32 %v447, %v453
  %v455 = vmul.f32 %v454, 1.442695
  %v456 = vpow.pop %v455
  %v457 = vsel %vm450, %v456, 0.0
  %458 = vadd.xlane.f32.xlu0 %v457
  %v459 = vpop.xlane.xlu0 %458
  %v460 = vrcp.pop %v459
  %v461 = vmul.f32 %v459, %v460
  %v462 = vsub.f32 1.0, %v461
  %v463 = vmul.f32 %v460, %v462
  %v464 = vadd.f32 %v460, %v463
  %vm465 = vweird.f32 %v459
  %vm466 = vweird.f32 %v460
  %vm467 = vmor %vm465, %vm466
  %v468 = vsel %vm467, %v460, %v464
  %v469 = vand.u32 2147483647, %v459
  %vm470 = vcmp.eq.f32.partialorder %v469, 8.507059e+37
  %v471 = vand.u32 %v459, 2147483648
  %v472 = vor.u32 1.1754944e-38, %v471
  %v473 = vsel %vm470, %v472, %v468
  %v474 = vmul.f32 1.0, %v473
  %v475 = vmul.f32 %v456, %v474
  %v476 = vpack.c.bf16 %v475, %v475
  %v479 = vunpack.c.h.b16 %v355
  %v480 = vunpack.c.l.b16 %v356
  %v481 = vunpack.c.h.b16 %v357
  %v482 = vunpack.c.l.b16 %v358
  %v483 = vpack.c.b16 %v481, %v479
  %v484 = vpack.c.b16 %v482, %v480
  %vm488 = vcmask 130048
  %v490 = vsel %vm488, %v476, 0
  %492 = vmatpush.bf16.msra.mxu0 0
  %493 = vmatpush.bf16.msra.mxu0 0
  %494 = vmatpush.bf16.msra.mxu0 0
  %495 = vmatpush.bf16.msra.mxu0 0
  %496 = vmatpush.bf16.msra.mxu0 0
  %497 = vmatpush.bf16.msra.mxu0 0
  %498 = vmatpush.bf16.msra.mxu0 0
  %499 = vmatpush.bf16.msra.mxu0 %v431
  %500 = vmatmul.bf16.gmra.mxu0 %v490
  %v501 = vpop.f32.mrf.mxu0
  %v502 = vadd.f32 0.0, %v501
  %v503 = vpop.f32.mrf.mxu0
  %504 = vdwg.mxu0
  %505 = vmatpush.bf16.msra.mxu0 0
  %506 = vmatpush.bf16.msra.mxu0 0
  %507 = vmatpush.bf16.msra.mxu0 0
  %508 = vmatpush.bf16.msra.mxu0 0
  %509 = vmatpush.bf16.msra.mxu0 0
  %510 = vmatpush.bf16.msra.mxu0 0
  %511 = vmatpush.bf16.msra.mxu0 0
  %512 = vmatpush.bf16.msra.mxu0 %v483
  %513 = vmatmul.bf16.gmra.mxu0 %v490
  %v514 = vpop.f32.mrf.mxu0
  %v515 = vadd.f32 0.0, %v514
  %v516 = vpop.f32.mrf.mxu0
  %517 = vdwg.mxu0
  %518 = vmatpush.bf16.msra.mxu0 0
  %519 = vmatpush.bf16.msra.mxu0 0
  %520 = vmatpush.bf16.msra.mxu0 0
  %521 = vmatpush.bf16.msra.mxu0 0
  %522 = vmatpush.bf16.msra.mxu0 0
  %523 = vmatpush.bf16.msra.mxu0 0
  %524 = vmatpush.bf16.msra.mxu0 0
  %525 = vmatpush.bf16.msra.mxu0 %v484
  %526 = vmatmul.bf16.gmra.mxu0 %v490
  %v527 = vpop.f32.mrf.mxu0
  %v528 = vadd.f32 0.0, %v527
  %v529 = vpop.f32.mrf.mxu0
  %530 = vdwg.mxu0
  %v531 = vpack.c.bf16 %v515, %v502
  %v532 = vpack.c.bf16 %v528, %v528
  %v533 = vld [vmem:[%s9] sm:$0x77]
  %v534 = vld [vmem:[%s9 + $0x8] sm:$0x7]
  %v535 = vunpack.c.l.bf16 %v531
  %v536 = vunpack.c.h.bf16 %v531
  %v537 = vunpack.c.l.bf16 %v532
  %v538 = vunpack.c.l.bf16 %v533
  %v539 = vunpack.c.h.bf16 %v533
  %v540 = vunpack.c.l.bf16 %v534
  %v541 = vmul.f32 %v535, %v538
  %v542 = vmul.f32 %v536, %v539
  %v543 = vmul.f32 %v537, %v540
  %v544 = vpack.c.bf16 %v541, %v541
  %v545 = vpack.c.bf16 %v542, %v542
  %v546 = vpack.c.bf16 %v543, %v543
  %v547 = vld [vmem:[%s6] sm:$0xff]
  %v548 = vld [vmem:[%s6 + $0x8] sm:$0xf]
  %v549 = vld [vmem:[%s6 + $0xc] sm:$0xff]
  %v550 = vld [vmem:[%s6 + $0x14] sm:$0xf]
  %v551 = vld [vmem:[%s6 + $0x18] sm:$0xff]
  %v552 = vld [vmem:[%s6 + $0x20] sm:$0xf]
  %v553 = vld [vmem:[%s6 + $0x24] sm:$0xff]
  %v554 = vld [vmem:[%s6 + $0x2c] sm:$0xf]
  %v555 = vld [vmem:[%s6 + $0x30] sm:$0xff]
  %v556 = vld [vmem:[%s6 + $0x38] sm:$0xf]
  %v557 = vld [vmem:[%s6 + $0x3c] sm:$0xff]
  %v558 = vld [vmem:[%s6 + $0x44] sm:$0xf]
  %v559 = vld [vmem:[%s6 + $0x48] sm:$0xff]
  %v560 = vld [vmem:[%s6 + $0x50] sm:$0xf]
  %v561 = vld [vmem:[%s6 + $0x54] sm:$0xff]
  %v562 = vld [vmem:[%s6 + $0x5c] sm:$0xf]
  %v563 = vld [vmem:[%s6 + $0x60] sm:$0xff]
  %v564 = vld [vmem:[%s6 + $0x68] sm:$0xf]
  %v565 = vld [vmem:[%s6 + $0x6c] sm:$0xff]
  %v566 = vld [vmem:[%s6 + $0x74] sm:$0xf]
  %v567 = vld [vmem:[%s6 + $0x78] sm:$0xff]
  %v568 = vld [vmem:[%s6 + $0x80] sm:$0xf]
  %v569 = vld [vmem:[%s6 + $0x84] sm:$0xff]
  %v570 = vld [vmem:[%s6 + $0x8c] sm:$0xf]
  %v571 = vld [vmem:[%s6 + $0x90] sm:$0xff]
  %v572 = vld [vmem:[%s6 + $0x98] sm:$0xf]
  %v573 = vld [vmem:[%s6 + $0x9c] sm:$0xff]
  %v574 = vld [vmem:[%s6 + $0xa4] sm:$0xf]
  %v575 = vld [vmem:[%s6 + $0xa8] sm:$0xff]
  %v576 = vld [vmem:[%s6 + $0xb0] sm:$0xf]
  %v577 = vld [vmem:[%s6 + $0xb4] sm:$0xff]
  %v578 = vld [vmem:[%s6 + $0xbc] sm:$0xf]
  %v579 = vld [vmem:[%s6 + $0xc0] sm:$0xff]
  %v580 = vld [vmem:[%s6 + $0xc8] sm:$0xf]
  %v581 = vld [vmem:[%s6 + $0xcc] sm:$0xff]
  %v582 = vld [vmem:[%s6 + $0xd4] sm:$0xf]
  %v583 = vld [vmem:[%s6 + $0xd8] sm:$0xff]
  %v584 = vld [vmem:[%s6 + $0xe0] sm:$0xf]
  %v585 = vld [vmem:[%s6 + $0xe4] sm:$0xff]
  %v586 = vld [vmem:[%s6 + $0xec] sm:$0xf]
  %v587 = vld [vmem:[%s6 + $0xf0] sm:$0xff]
  %v588 = vld [vmem:[%s6 + $0xf8] sm:$0xf]
  %v589 = vld [vmem:[%s6 + $0xfc] sm:$0xff]
  %v590 = vld [vmem:[%s6 + $0x104] sm:$0xf]
  %v591 = vld [vmem:[%s6 + $0x108] sm:$0xff]
  %v592 = vld [vmem:[%s6 + $0x110] sm:$0xf]
  %v593 = vld [vmem:[%s6 + $0x114] sm:$0xff]
  %v594 = vld [vmem:[%s6 + $0x11c] sm:$0xf]
  %v595 = vld [vmem:[%s6 + $0x120] sm:$0xff]
  %v596 = vld [vmem:[%s6 + $0x128] sm:$0xf]
  %v597 = vld [vmem:[%s6 + $0x12c] sm:$0xff]
  %v598 = vld [vmem:[%s6 + $0x134] sm:$0xf]
  %v599 = vld [vmem:[%s6 + $0x138] sm:$0xff]
  %v600 = vld [vmem:[%s6 + $0x140] sm:$0xf]
  %v601 = vld [vmem:[%s6 + $0x144] sm:$0xff]
  %v602 = vld [vmem:[%s6 + $0x14c] sm:$0xf]
  %v603 = vld [vmem:[%s6 + $0x150] sm:$0xff]
  %v604 = vld [vmem:[%s6 + $0x158] sm:$0xf]
  %v605 = vld [vmem:[%s6 + $0x15c] sm:$0xff]
  %v606 = vld [vmem:[%s6 + $0x164] sm:$0xf]
  %v607 = vld [vmem:[%s6 + $0x168] sm:$0xff]
  %v608 = vld [vmem:[%s6 + $0x170] sm:$0xf]
  %v609 = vld [vmem:[%s6 + $0x174] sm:$0xff]
  %v610 = vld [vmem:[%s6 + $0x17c] sm:$0xf]
  %v611 = vld [vmem:[%s6 + $0x180] sm:$0xff]
  %v612 = vld [vmem:[%s6 + $0x188] sm:$0xf]
  %v613 = vld [vmem:[%s6 + $0x18c] sm:$0xff]
  %v614 = vld [vmem:[%s6 + $0x194] sm:$0xf]
  %v615 = vld [vmem:[%s6 + $0x198] sm:$0xff]
  %v616 = vld [vmem:[%s6 + $0x1a0] sm:$0xf]
  %v617 = vld [vmem:[%s6 + $0x1a4] sm:$0xff]
  %v618 = vld [vmem:[%s6 + $0x1ac] sm:$0xf]
  %v619 = vld [vmem:[%s7] sm:$0x3f]
  %v620 = vld [vmem:[%s7 + $0x8] sm:$0x3f]
  %v621 = vld [vmem:[%s7 + $0x10] sm:$0x3f]
  %v694 = vunpack.c.l.b16 %v547
  %v695 = vunpack.c.h.b16 %v547
  %v696 = vunpack.c.l.b16 %v548
  %v697 = vunpack.c.l.b16 %v549
  %v698 = vunpack.c.h.b16 %v549
  %v699 = vunpack.c.l.b16 %v550
  %v700 = vunpack.c.l.b16 %v551
  %v701 = vunpack.c.h.b16 %v551
  %v702 = vunpack.c.l.b16 %v552
  %v703 = vunpack.c.l.b16 %v553
  %v704 = vunpack.c.h.b16 %v553
  %v705 = vunpack.c.l.b16 %v554
  %v706 = vunpack.c.l.b16 %v555
  %v707 = vunpack.c.h.b16 %v555
  %v708 = vunpack.c.l.b16 %v556
  %v709 = vunpack.c.l.b16 %v557
  %v710 = vunpack.c.h.b16 %v557
  %v711 = vunpack.c.l.b16 %v558
  %v712 = vunpack.c.l.b16 %v559
  %v713 = vunpack.c.h.b16 %v559
  %v714 = vunpack.c.l.b16 %v560
  %v715 = vunpack.c.l.b16 %v561
  %v716 = vunpack.c.h.b16 %v561
  %v717 = vunpack.c.l.b16 %v562
  %v718 = vunpack.c.l.b16 %v563
  %v719 = vunpack.c.h.b16 %v563
  %v720 = vunpack.c.l.b16 %v564
  %v721 = vunpack.c.l.b16 %v565
  %v722 = vunpack.c.h.b16 %v565
  %v723 = vunpack.c.l.b16 %v566
  %v724 = vunpack.c.l.b16 %v567
  %v725 = vunpack.c.h.b16 %v567
  %v726 = vunpack.c.l.b16 %v568
  %v727 = vunpack.c.l.b16 %v569
  %v728 = vunpack.c.h.b16 %v569
  %v729 = vunpack.c.l.b16 %v570
  %v730 = vunpack.c.l.b16 %v571
  %v731 = vunpack.c.h.b16 %v571
  %v732 = vunpack.c.l.b16 %v572
  %v733 = vunpack.c.l.b16 %v573
  %v734 = vunpack.c.h.b16 %v573
  %v735 = vunpack.c.l.b16 %v574
  %v736 = vunpack.c.l.b16 %v575
  %v737 = vunpack.c.h.b16 %v575
  %v738 = vunpack.c.l.b16 %v576
  %v739 = vunpack.c.l.b16 %v577
  %v740 = vunpack.c.h.b16 %v577
  %v741 = vunpack.c.l.b16 %v578
  %v742 = vunpack.c.l.b16 %v579
  %v743 = vunpack.c.h.b16 %v579
  %v744 = vunpack.c.l.b16 %v580
  %v745 = vunpack.c.l.b16 %v581
  %v746 = vunpack.c.h.b16 %v581
  %v747 = vunpack.c.l.b16 %v582
  %v748 = vunpack.c.l.b16 %v583
  %v749 = vunpack.c.h.b16 %v583
  %v750 = vunpack.c.l.b16 %v584
  %v751 = vunpack.c.l.b16 %v585
  %v752 = vunpack.c.h.b16 %v585
  %v753 = vunpack.c.l.b16 %v586
  %v754 = vunpack.c.l.b16 %v587
  %v755 = vunpack.c.h.b16 %v587
  %v756 = vunpack.c.l.b16 %v588
  %v757 = vunpack.c.l.b16 %v589
  %v758 = vunpack.c.h.b16 %v589
  %v759 = vunpack.c.l.b16 %v590
  %v760 = vunpack.c.l.b16 %v591
  %v761 = vunpack.c.h.b16 %v591
  %v762 = vunpack.c.l.b16 %v592
  %v763 = vunpack.c.l.b16 %v593
  %v764 = vunpack.c.h.b16 %v593
  %v765 = vunpack.c.l.b16 %v594
  %v766 = vunpack.c.l.b16 %v595
  %v767 = vunpack.c.h.b16 %v595
  %v768 = vunpack.c.l.b16 %v596
  %v769 = vunpack.c.l.b16 %v597
  %v770 = vunpack.c.h.b16 %v597
  %v771 = vunpack.c.l.b16 %v598
  %v772 = vunpack.c.l.b16 %v599
  %v773 = vunpack.c.h.b16 %v599
  %v774 = vunpack.c.l.b16 %v600
  %v775 = vunpack.c.l.b16 %v601
  %v776 = vunpack.c.h.b16 %v601
  %v777 = vunpack.c.l.b16 %v602
  %v778 = vunpack.c.l.b16 %v603
  %v779 = vunpack.c.h.b16 %v603
  %v780 = vunpack.c.l.b16 %v604
  %v781 = vunpack.c.l.b16 %v605
  %v782 = vunpack.c.h.b16 %v605
  %v783 = vunpack.c.l.b16 %v606
  %v784 = vunpack.c.l.b16 %v607
  %v785 = vunpack.c.h.b16 %v607
  %v786 = vunpack.c.l.b16 %v608
  %v787 = vunpack.c.l.b16 %v609
  %v788 = vunpack.c.h.b16 %v609
  %v789 = vunpack.c.l.b16 %v610
  %v790 = vunpack.c.l.b16 %v611
  %v791 = vunpack.c.h.b16 %v611
  %v792 = vunpack.c.l.b16 %v612
  %v793 = vunpack.c.l.b16 %v613
  %v794 = vunpack.c.h.b16 %v613
  %v795 = vunpack.c.l.b16 %v614
  %v796 = vunpack.c.l.b16 %v615
  %v797 = vunpack.c.h.b16 %v615
  %v798 = vunpack.c.l.b16 %v616
  %v799 = vunpack.c.l.b16 %v617
  %v800 = vunpack.c.h.b16 %v617
  %v801 = vunpack.c.l.b16 %v618
  %v802 = vpack.c.b16 %v697, %v694
  %v803 = vpack.c.b16 %v698, %v695
  %v804 = vpack.c.b16 %v699, %v696
  %v805 = vpack.c.b16 %v703, %v700
  %v806 = vpack.c.b16 %v704, %v701
  %v807 = vpack.c.b16 %v705, %v702
  %v808 = vpack.c.b16 %v709, %v706
  %v809 = vpack.c.b16 %v710, %v707
  %v810 = vpack.c.b16 %v711, %v708
  %v811 = vpack.c.b16 %v715, %v712
  %v812 = vpack.c.b16 %v716, %v713
  %v813 = vpack.c.b16 %v717, %v714
  %v814 = vpack.c.b16 %v721, %v718
  %v815 = vpack.c.b16 %v722, %v719
  %v816 = vpack.c.b16 %v723, %v720
  %v817 = vpack.c.b16 %v727, %v724
  %v818 = vpack.c.b16 %v728, %v725
  %v819 = vpack.c.b16 %v729, %v726
  %v820 = vpack.c.b16 %v733, %v730
  %v821 = vpack.c.b16 %v734, %v731
  %v822 = vpack.c.b16 %v735, %v732
  %v823 = vpack.c.b16 %v739, %v736
  %v824 = vpack.c.b16 %v740, %v737
  %v825 = vpack.c.b16 %v741, %v738
  %v826 = vpack.c.b16 %v745, %v742
  %v827 = vpack.c.b16 %v746, %v743
  %v828 = vpack.c.b16 %v747, %v744
  %v829 = vpack.c.b16 %v751, %v748
  %v830 = vpack.c.b16 %v752, %v749
  %v831 = vpack.c.b16 %v753, %v750
  %v832 = vpack.c.b16 %v757, %v754
  %v833 = vpack.c.b16 %v758, %v755
  %v834 = vpack.c.b16 %v759, %v756
  %v835 = vpack.c.b16 %v763, %v760
  %v836 = vpack.c.b16 %v764, %v761
  %v837 = vpack.c.b16 %v765, %v762
  %v838 = vpack.c.b16 %v769, %v766
  %v839 = vpack.c.b16 %v770, %v767
  %v840 = vpack.c.b16 %v771, %v768
  %v841 = vpack.c.b16 %v775, %v772
  %v842 = vpack.c.b16 %v776, %v773
  %v843 = vpack.c.b16 %v777, %v774
  %v844 = vpack.c.b16 %v781, %v778
  %v845 = vpack.c.b16 %v782, %v779
  %v846 = vpack.c.b16 %v783, %v780
  %v847 = vpack.c.b16 %v787, %v784
  %v848 = vpack.c.b16 %v788, %v785
  %v849 = vpack.c.b16 %v789, %v786
  %v850 = vpack.c.b16 %v793, %v790
  %v851 = vpack.c.b16 %v794, %v791
  %v852 = vpack.c.b16 %v795, %v792
  %v853 = vpack.c.b16 %v799, %v796
  %v854 = vpack.c.b16 %v800, %v797
  %v855 = vpack.c.b16 %v801, %v798
  %vm910 = vcmask 261120
  %v912 = vsel %vm910, %v546, 0
  %914 = vmatpush.bf16.msra.mxu0 %v823
  %915 = vmatpush.bf16.msra.mxu0 %v820
  %916 = vmatpush.bf16.msra.mxu0 %v817
  %917 = vmatpush.bf16.msra.mxu0 %v814
  %918 = vmatpush.bf16.msra.mxu0 %v811
  %919 = vmatpush.bf16.msra.mxu0 %v808
  %920 = vmatpush.bf16.msra.mxu0 %v805
  %921 = vmatpush.bf16.msra.mxu0 %v802
  %922 = vmatmul.bf16.gmra.mxu0 %v544
  %v923 = vpop.f32.mrf.mxu0
  %v924 = vadd.f32 %v619, %v923
  %v925 = vpop.f32.mrf.mxu0
  %926 = vdwg.mxu0
  %927 = vmatpush.bf16.msra.mxu0 %v847
  %928 = vmatpush.bf16.msra.mxu0 %v844
  %929 = vmatpush.bf16.msra.mxu0 %v841
  %930 = vmatpush.bf16.msra.mxu0 %v838
  %931 = vmatpush.bf16.msra.mxu0 %v835
  %932 = vmatpush.bf16.msra.mxu0 %v832
  %933 = vmatpush.bf16.msra.mxu0 %v829
  %934 = vmatpush.bf16.msra.mxu0 %v826
  %935 = vmatmul.bf16.gmra.mxu0 %v545
  %v936 = vpop.f32.mrf.mxu0
  %v937 = vadd.f32 %v924, %v936
  %v938 = vpop.f32.mrf.mxu0
  %939 = vdwg.mxu0
  %940 = vmatpush.bf16.msra.mxu0 0
  %941 = vmatpush.bf16.msra.mxu0 0
  %942 = vmatpush.bf16.msra.mxu0 0
  %943 = vmatpush.bf16.msra.mxu0 0
  %944 = vmatpush.bf16.msra.mxu0 0
  %945 = vmatpush.bf16.msra.mxu0 0
  %946 = vmatpush.bf16.msra.mxu0 %v853
  %947 = vmatpush.bf16.msra.mxu0 %v850
  %948 = vmatmul.bf16.gmra.mxu0 %v912
  %v949 = vpop.f32.mrf.mxu0
  %v950 = vadd.f32 %v937, %v949
  %v951 = vpop.f32.mrf.mxu0
  %952 = vdwg.mxu0
  %953 = vmatpush.bf16.msra.mxu0 %v824
  %954 = vmatpush.bf16.msra.mxu0 %v821
  %955 = vmatpush.bf16.msra.mxu0 %v818
  %956 = vmatpush.bf16.msra.mxu0 %v815
  %957 = vmatpush.bf16.msra.mxu0 %v812
  %958 = vmatpush.bf16.msra.mxu0 %v809
  %959 = vmatpush.bf16.msra.mxu0 %v806
  %960 = vmatpush.bf16.msra.mxu0 %v803
  %961 = vmatmul.bf16.gmra.mxu0 %v544
  %v962 = vpop.f32.mrf.mxu0
  %v963 = vadd.f32 %v620, %v962
  %v964 = vpop.f32.mrf.mxu0
  %965 = vdwg.mxu0
  %966 = vmatpush.bf16.msra.mxu0 %v848
  %967 = vmatpush.bf16.msra.mxu0 %v845
  %968 = vmatpush.bf16.msra.mxu0 %v842
  %969 = vmatpush.bf16.msra.mxu0 %v839
  %970 = vmatpush.bf16.msra.mxu0 %v836
  %971 = vmatpush.bf16.msra.mxu0 %v833
  %972 = vmatpush.bf16.msra.mxu0 %v830
  %973 = vmatpush.bf16.msra.mxu0 %v827
  %974 = vmatmul.bf16.gmra.mxu0 %v545
  %v975 = vpop.f32.mrf.mxu0
  %v976 = vadd.f32 %v963, %v975
  %v977 = vpop.f32.mrf.mxu0
  %978 = vdwg.mxu0
  %979 = vmatpush.bf16.msra.mxu0 0
  %980 = vmatpush.bf16.msra.mxu0 0
  %981 = vmatpush.bf16.msra.mxu0 0
  %982 = vmatpush.bf16.msra.mxu0 0
  %983 = vmatpush.bf16.msra.mxu0 0
  %984 = vmatpush.bf16.msra.mxu0 0
  %985 = vmatpush.bf16.msra.mxu0 %v854
  %986 = vmatpush.bf16.msra.mxu0 %v851
  %987 = vmatmul.bf16.gmra.mxu0 %v912
  %v988 = vpop.f32.mrf.mxu0
  %v989 = vadd.f32 %v976, %v988
  %v990 = vpop.f32.mrf.mxu0
  %991 = vdwg.mxu0
  %992 = vmatpush.bf16.msra.mxu0 %v825
  %993 = vmatpush.bf16.msra.mxu0 %v822
  %994 = vmatpush.bf16.msra.mxu0 %v819
  %995 = vmatpush.bf16.msra.mxu0 %v816
  %996 = vmatpush.bf16.msra.mxu0 %v813
  %997 = vmatpush.bf16.msra.mxu0 %v810
  %998 = vmatpush.bf16.msra.mxu0 %v807
  %999 = vmatpush.bf16.msra.mxu0 %v804
  %1000 = vmatmul.bf16.gmra.mxu0 %v544
  %v1001 = vpop.f32.mrf.mxu0
  %v1002 = vadd.f32 %v621, %v1001
  %v1003 = vpop.f32.mrf.mxu0
  %1004 = vdwg.mxu0
  %1005 = vmatpush.bf16.msra.mxu0 %v849
  %1006 = vmatpush.bf16.msra.mxu0 %v846
  %1007 = vmatpush.bf16.msra.mxu0 %v843
  %1008 = vmatpush.bf16.msra.mxu0 %v840
  %1009 = vmatpush.bf16.msra.mxu0 %v837
  %1010 = vmatpush.bf16.msra.mxu0 %v834
  %1011 = vmatpush.bf16.msra.mxu0 %v831
  %1012 = vmatpush.bf16.msra.mxu0 %v828
  %1013 = vmatmul.bf16.gmra.mxu0 %v545
  %v1014 = vpop.f32.mrf.mxu0
  %v1015 = vadd.f32 %v1002, %v1014
  %v1016 = vpop.f32.mrf.mxu0
  %1017 = vdwg.mxu0
  %1018 = vmatpush.bf16.msra.mxu0 0
  %1019 = vmatpush.bf16.msra.mxu0 0
  %1020 = vmatpush.bf16.msra.mxu0 0
  %1021 = vmatpush.bf16.msra.mxu0 0
  %1022 = vmatpush.bf16.msra.mxu0 0
  %1023 = vmatpush.bf16.msra.mxu0 0
  %1024 = vmatpush.bf16.msra.mxu0 %v855
  %1025 = vmatpush.bf16.msra.mxu0 %v852
  %1026 = vmatmul.bf16.gmra.mxu0 %v912
  %v1027 = vpop.f32.mrf.mxu0
  %v1028 = vadd.f32 %v1015, %v1027
  %v1029 = vpop.f32.mrf.mxu0
  %1030 = vdwg.mxu0
  %v1031 = vpack.c.bf16 %v950, %v950
  %v1032 = vpack.c.bf16 %v989, %v989
  %v1033 = vpack.c.bf16 %v1028, %v1028
  %v1035 = vsel %vm910, %v1033, 0
  %v1038 = vsel %vm910, %v484, 0
  %1040 = vmatpush.bf16.xpose.msra.mxu0 0
  %1041 = vmatpush.bf16.xpose.msra.mxu0 0
  %1042 = vmatpush.bf16.xpose.msra.mxu0 0
  %1043 = vmatpush.bf16.xpose.msra.mxu0 0
  %1044 = vmatpush.bf16.xpose.msra.mxu0 0
  %1045 = vmatpush.bf16.xpose.msra.mxu0 0
  %1046 = vmatpush.bf16.xpose.msra.mxu0 0
  %1047 = vmatpush.bf16.xpose.msra.mxu0 %v431
  %1048 = vmatmul.bf16.gmra.mxu0 %v1031
  %v1049 = vpop.f32.mrf.mxu0
  %v1050 = vadd.f32 0.0, %v1049
  %v1051 = vpop.f32.mrf.mxu0
  %1052 = vdwg.mxu0
  %1053 = vmatpush.bf16.xpose.msra.mxu0 0
  %1054 = vmatpush.bf16.xpose.msra.mxu0 0
  %1055 = vmatpush.bf16.xpose.msra.mxu0 0
  %1056 = vmatpush.bf16.xpose.msra.mxu0 0
  %1057 = vmatpush.bf16.xpose.msra.mxu0 0
  %1058 = vmatpush.bf16.xpose.msra.mxu0 0
  %1059 = vmatpush.bf16.xpose.msra.mxu0 0
  %1060 = vmatpush.bf16.xpose.msra.mxu0 %v483
  %1061 = vmatmul.bf16.gmra.mxu0 %v1032
  %v1062 = vpop.f32.mrf.mxu0
  %v1063 = vadd.f32 %v1050, %v1062
  %v1064 = vpop.f32.mrf.mxu0
  %1065 = vdwg.mxu0
  %1066 = vmatpush.bf16.xpose.msra.mxu0 0
  %1067 = vmatpush.bf16.xpose.msra.mxu0 0
  %1068 = vmatpush.bf16.xpose.msra.mxu0 0
  %1069 = vmatpush.bf16.xpose.msra.mxu0 0
  %1070 = vmatpush.bf16.xpose.msra.mxu0 0
  %1071 = vmatpush.bf16.xpose.msra.mxu0 0
  %1072 = vmatpush.bf16.xpose.msra.mxu0 0
  %1073 = vmatpush.bf16.xpose.msra.mxu0 %v1038
  %1074 = vmatmul.bf16.gmra.mxu0 %v1035
  %v1075 = vpop.f32.mrf.mxu0
  %v1076 = vadd.f32 %v1063, %v1075
  %v1077 = vpop.f32.mrf.mxu0
  %1078 = vdwg.mxu0
  %v1079 = vtanh.pop %v1076
  %v1080 = vmul.f32 %v1079, 10.0
  %v1082 = vrot.slane %v1080, 1
  %v1083 = vrot.slane %v1080, 2
  %v1084 = vrot.slane %v1080, 3
  %v1085 = vrot.slane %v1080, 4
  %v1086 = vrot.slane %v1080, 5
  %1092 = vst [vmem:[#allocation1] ss:$9 sm:$0xff] %v1080
  %s1093 = scalar_lea.vmem [#allocation1], 1
  %1094 = vst [vmem:[%s1093] ss:$9 sm:$0xff] %v1082
  %s1095 = scalar_lea.vmem [#allocation1], 2
  %1096 = vst [vmem:[%s1095] ss:$9 sm:$0xff] %v1083
  %v1097 = vld [vmem:[#allocation1] sm:$0xff]
  %1098 = vst [vmem:[#allocation1] ss:$9 sm:$0xff] %v1084
  %1099 = vst [vmem:[%s1093] ss:$9 sm:$0xff] %v1085
  %1100 = vst [vmem:[%s1095] ss:$9 sm:$0xff] %v1086
  %v1101 = vld [vmem:[#allocation1] sm:$0xff]
  %vm1104 = vcmask 124928
  %v1105 = vsel %vm1104, %v1097, -inf
  %v1106 = vrot.slane %v1105, 4
  %v1107 = vmax.f32 %v1105, %v1106
  %v1108 = vrot.slane %v1107, 2
  %v1109 = vmax.f32 %v1107, %v1108
  %v1110 = vrot.slane %v1109, 1
  %v1111 = vmax.f32 %v1109, %v1110
  %v1112 = vsel %vm1104, %v1101, -inf
  %v1113 = vrot.slane %v1112, 4
  %v1114 = vmax.f32 %v1112, %v1113
  %v1115 = vrot.slane %v1114, 2
  %v1116 = vmax.f32 %v1114, %v1115
  %v1117 = vrot.slane %v1116, 1
  %v1118 = vmax.f32 %v1116, %v1117
  %v1121 = vrot.slane %v1111, 1
  %v1122 = vrot.slane %v1111, 2
  %v1123 = vrot.slane %v1118, 1
  %v1124 = vrot.slane %v1118, 2
  %v1129 = vsub.f32 %v1080, %v1111
  %v1130 = vsub.f32 %v1082, %v1121
  %v1131 = vsub.f32 %v1083, %v1122
  %v1132 = vsub.f32 %v1084, %v1118
  %v1133 = vsub.f32 %v1085, %v1123
  %v1134 = vsub.f32 %v1086, %v1124
  %v1135 = vmul.f32 %v1129, 1.442695
  %v1136 = vpow.pop %v1135
  %v1137 = vmul.f32 %v1130, 1.442695
  %v1138 = vpow.pop %v1137
  %v1139 = vmul.f32 %v1131, 1.442695
  %v1140 = vpow.pop %v1139
  %v1141 = vmul.f32 %v1132, 1.442695
  %v1142 = vpow.pop %v1141
  %v1143 = vmul.f32 %v1133, 1.442695
  %v1144 = vpow.pop %v1143
  %v1145 = vmul.f32 %v1134, 1.442695
  %v1146 = vpow.pop %v1145
  %1153 = vst [vmem:[#allocation1] ss:$9 sm:$0xff] %v1136
  %s1154 = scalar_lea.vmem [#allocation1], 1
  %1155 = vst [vmem:[%s1154] ss:$9 sm:$0xff] %v1138
  %s1156 = scalar_lea.vmem [#allocation1], 2
  %1157 = vst [vmem:[%s1156] ss:$9 sm:$0xff] %v1140
  %v1158 = vld [vmem:[#allocation1] sm:$0xff]
  %1159 = vst [vmem:[#allocation1] ss:$9 sm:$0xff] %v1142
  %1160 = vst [vmem:[%s1154] ss:$9 sm:$0xff] %v1144
  %1161 = vst [vmem:[%s1156] ss:$9 sm:$0xff] %v1146
  %v1162 = vld [vmem:[#allocation1] sm:$0xff]
  %v1165 = vsel %vm1104, %v1158, 0.0
  %v1166 = vrot.slane %v1165, 4
  %v1167 = vadd.f32 %v1165, %v1166
  %v1168 = vrot.slane %v1167, 2
  %v1169 = vadd.f32 %v1167, %v1168
  %v1170 = vrot.slane %v1169, 1
  %v1171 = vadd.f32 %v1169, %v1170
  %v1172 = vsel %vm1104, %v1162, 0.0
  %v1173 = vrot.slane %v1172, 4
  %v1174 = vadd.f32 %v1172, %v1173
  %v1175 = vrot.slane %v1174, 2
  %v1176 = vadd.f32 %v1174, %v1175
  %v1177 = vrot.slane %v1176, 1
  %v1178 = vadd.f32 %v1176, %v1177
  %v1181 = vrot.slane %v1171, 1
  %v1182 = vrot.slane %v1171, 2
  %v1183 = vrot.slane %v1178, 1
  %v1184 = vrot.slane %v1178, 2
  %v1189 = vrcp.pop %v1171
  %v1190 = vmul.f32 %v1171, %v1189
  %v1191 = vsub.f32 1.0, %v1190
  %v1192 = vmul.f32 %v1189, %v1191
  %v1193 = vadd.f32 %v1189, %v1192
  %vm1194 = vweird.f32 %v1171
  %vm1195 = vweird.f32 %v1189
  %vm1196 = vmor %vm1194, %vm1195
  %v1197 = vsel %vm1196, %v1189, %v1193
  %v1198 = vand.u32 2147483647, %v1171
  %vm1199 = vcmp.eq.f32.partialorder %v1198, 8.507059e+37
  %v1200 = vand.u32 %v1171, 2147483648
  %v1201 = vor.u32 1.1754944e-38, %v1200
  %v1202 = vsel %vm1199, %v1201, %v1197
  %v1203 = vmul.f32 %v1136, %v1202
  %v1204 = vrcp.pop %v1181
  %v1205 = vmul.f32 %v1181, %v1204
  %v1206 = vsub.f32 1.0, %v1205
  %v1207 = vmul.f32 %v1204, %v1206
  %v1208 = vadd.f32 %v1204, %v1207
  %vm1209 = vweird.f32 %v1181
  %vm1210 = vweird.f32 %v1204
  %vm1211 = vmor %vm1209, %vm1210
  %v1212 = vsel %vm1211, %v1204, %v1208
  %v1213 = vand.u32 2147483647, %v1181
  %vm1214 = vcmp.eq.f32.partialorder %v1213, 8.507059e+37
  %v1215 = vand.u32 %v1181, 2147483648
  %v1216 = vor.u32 1.1754944e-38, %v1215
  %v1217 = vsel %vm1214, %v1216, %v1212
  %v1218 = vmul.f32 %v1138, %v1217
  %v1219 = vrcp.pop %v1182
  %v1220 = vmul.f32 %v1182, %v1219
  %v1221 = vsub.f32 1.0, %v1220
  %v1222 = vmul.f32 %v1219, %v1221
  %v1223 = vadd.f32 %v1219, %v1222
  %vm1224 = vweird.f32 %v1182
  %vm1225 = vweird.f32 %v1219
  %vm1226 = vmor %vm1224, %vm1225
  %v1227 = vsel %vm1226, %v1219, %v1223
  %v1228 = vand.u32 2147483647, %v1182
  %vm1229 = vcmp.eq.f32.partialorder %v1228, 8.507059e+37
  %v1230 = vand.u32 %v1182, 2147483648
  %v1231 = vor.u32 1.1754944e-38, %v1230
  %v1232 = vsel %vm1229, %v1231, %v1227
  %v1233 = vmul.f32 %v1140, %v1232
  %v1234 = vrcp.pop %v1178
  %v1235 = vmul.f32 %v1178, %v1234
  %v1236 = vsub.f32 1.0, %v1235
  %v1237 = vmul.f32 %v1234, %v1236
  %v1238 = vadd.f32 %v1234, %v1237
  %vm1239 = vweird.f32 %v1178
  %vm1240 = vweird.f32 %v1234
  %vm1241 = vmor %vm1239, %vm1240
  %v1242 = vsel %vm1241, %v1234, %v1238
  %v1243 = vand.u32 2147483647, %v1178
  %vm1244 = vcmp.eq.f32.partialorder %v1243, 8.507059e+37
  %v1245 = vand.u32 %v1178, 2147483648
  %v1246 = vor.u32 1.1754944e-38, %v1245
  %v1247 = vsel %vm1244, %v1246, %v1242
  %v1248 = vmul.f32 %v1142, %v1247
  %v1249 = vrcp.pop %v1183
  %v1250 = vmul.f32 %v1183, %v1249
  %v1251 = vsub.f32 1.0, %v1250
  %v1252 = vmul.f32 %v1249, %v1251
  %v1253 = vadd.f32 %v1249, %v1252
  %vm1254 = vweird.f32 %v1183
  %vm1255 = vweird.f32 %v1249
  %vm1256 = vmor %vm1254, %vm1255
  %v1257 = vsel %vm1256, %v1249, %v1253
  %v1258 = vand.u32 2147483647, %v1183
  %vm1259 = vcmp.eq.f32.partialorder %v1258, 8.507059e+37
  %v1260 = vand.u32 %v1183, 2147483648
  %v1261 = vor.u32 1.1754944e-38, %v1260
  %v1262 = vsel %vm1259, %v1261, %v1257
  %v1263 = vmul.f32 %v1144, %v1262
  %v1264 = vrcp.pop %v1184
  %v1265 = vmul.f32 %v1184, %v1264
  %v1266 = vsub.f32 1.0, %v1265
  %v1267 = vmul.f32 %v1264, %v1266
  %v1268 = vadd.f32 %v1264, %v1267
  %vm1269 = vweird.f32 %v1184
  %vm1270 = vweird.f32 %v1264
  %vm1271 = vmor %vm1269, %vm1270
  %v1272 = vsel %vm1271, %v1264, %v1268
  %v1273 = vand.u32 2147483647, %v1184
  %vm1274 = vcmp.eq.f32.partialorder %v1273, 8.507059e+37
  %v1275 = vand.u32 %v1184, 2147483648
  %v1276 = vor.u32 1.1754944e-38, %v1275
  %v1277 = vsel %vm1274, %v1276, %v1272
  %v1278 = vmul.f32 %v1146, %v1277
  %1285 = vst [vmem:[#allocation1] ss:$9 sm:$0xff] %v1203
  %s1286 = scalar_lea.vmem [#allocation1], 1
  %1287 = vst [vmem:[%s1286] ss:$9 sm:$0xff] %v1218
  %s1288 = scalar_lea.vmem [#allocation1], 2
  %1289 = vst [vmem:[%s1288] ss:$9 sm:$0xff] %v1233
  %s1290 = scalar_lea.vmem [#allocation1], 3
  %1291 = vst [vmem:[%s1290] ss:$9 sm:$0xff] %v1248
  %s1292 = scalar_lea.vmem [#allocation1], 4
  %1293 = vst [vmem:[%s1292] ss:$9 sm:$0xff] %v1263
  %s1294 = scalar_lea.vmem [#allocation1], 5
  %1295 = vst [vmem:[%s1294] ss:$9 sm:$0xff] %v1278
  %v1296 = vld [vmem:[#allocation1] sm:$0xff]
  %1298 = vst.msk [vmem:[%s11] sm:$0x3f] %vm450, %v1296
  // Predicated region
  $region46: #{attention_decoding_forward.1} parent=0 // pred_check
    _
  $region47: #{attention_decoding_forward.1} parent=0 // pred_check_branch
    %1300 = sbr.rel (0) target = $region49
  $region48: #{attention_decoding_forward.1} parent=0 // pred_region
    _
  $region49: #{attention_decoding_forward.1} parent=0 // pred_fallthru
    _
  // Predicated region
  $region50: #{attention_decoding_forward.1} parent=0 // pred_check
    _
  $region51: #{attention_decoding_forward.1} parent=0 // pred_check_branch
    %1302 = sbr.rel (0) target = $region53
  $region52: #{attention_decoding_forward.1} parent=0 // pred_region
    _
  $region53: #{attention_decoding_forward.1} parent=0 // pred_fallthru
    _

</llo_original>
